<compile_context>
chip_gen: v7x
topology: tpu7x:2x2x1
jax: 0.10.0
libtpu: 0.0.40
codegen_flags: <defaults>
</compile_context>

<pallas_src>
import numpy as np
import jax
import jax.numpy as jnp
from jax.experimental import pallas as pl
from jax.experimental.pallas import tpu as pltpu


_BATCH_BLOCK = 8  # sublane-aligned rows per grid step; batch axis is "parallel"


# ----------------------------------------------------------------------------
# Weight-only preprocessing: Conv2d(k=4, s=2, p=1, bias=False) as a dense matrix
# acting on CHW-flattened activations.  Depends only on weights + static shapes,
# so in a training loop it is built once per weight update and amortized over
# every discriminator call.
# ----------------------------------------------------------------------------
def _conv_as_dense_matrix(w, hin, win, stride=2, pad=1):
    cout, cin, kh_sz, kw_sz = w.shape
    ho = (hin + 2 * pad - kh_sz) // stride + 1
    wo = (win + 2 * pad - kw_sz) // stride + 1

    # Static (numpy) index computation of the conv's sparsity pattern.
    oh, ow, kh, kw = np.meshgrid(np.arange(ho), np.arange(wo),
                                 np.arange(kh_sz), np.arange(kw_sz), indexing="ij")
    ih = oh * stride + kh - pad
    iw = ow * stride + kw - pad
    valid = (ih >= 0) & (ih < hin) & (iw >= 0) & (iw < win)
    oh, ow, kh, kw, ih, iw = (a[valid] for a in (oh, ow, kh, kw, ih, iw))

    ci = np.arange(cin)[None, :, None]
    co = np.arange(cout)[None, None, :]
    ih = ih[:, None, None]; iw = iw[:, None, None]
    oh = oh[:, None, None]; ow = ow[:, None, None]
    kh = kh[:, None, None]; kw = kw[:, None, None]

    in_idx = ci * (hin * win) + ih * win + iw                       # (n, Cin, 1)
    out_idx = co * (ho * wo) + oh * wo + ow                         # (n, 1, Cout)
    w_idx = ((co * cin + ci) * kh_sz + kh) * kw_sz + kw             # (n, Cin, Cout)
    in_idx, out_idx, w_idx = np.broadcast_arrays(in_idx, out_idx, w_idx)

    vals = w.reshape(-1)[w_idx.ravel()]
    t = jnp.zeros((cin * hin * win, cout * ho * wo), w.dtype)
    t = t.at[in_idx.ravel(), out_idx.ravel()].set(vals)             # no dup indices
    return t, ho, wo


# ----------------------------------------------------------------------------
# Fused Pallas kernel: all conv blocks + LayerNorm + LeakyReLU + final conv.
# Ref order: x, (T, gamma, beta) per block, wf, bias(SMEM), out, info.
# ----------------------------------------------------------------------------
def _make_fused_kernel(n_blocks):
    def kernel(*refs):
        x_ref = refs[0]
        blk = refs[1:1 + 3 * n_blocks]
        wf_ref = refs[1 + 3 * n_blocks]
        bias_ref = refs[2 + 3 * n_blocks]
        out_ref = refs[3 + 3 * n_blocks]
        info_ref = refs[4 + 3 * n_blocks]

        h = x_ref[...]
        for k in range(n_blocks):
            t_ref, g_ref, b_ref = blk[3 * k], blk[3 * k + 1], blk[3 * k + 2]
            # Conv2d(k=4,s=2,p=1) as one dense MXU matmul on CHW-flattened rows.
            y = jnp.dot(h.astype(t_ref.dtype), t_ref[...],
                        preferred_element_type=jnp.float32)
            # Per-sample LayerNorm over the whole (C,H,W) feature map
            # (torch defaults: biased variance, eps=1e-5).  Explicit per-row
            # axis reduction -> stays correct if the batch axis is ever tiled;
            # the feature axis must NOT be tiled.
            mean = jnp.mean(y, axis=-1, keepdims=True)
            var = jnp.mean(jnp.square(y - mean), axis=-1, keepdims=True)
            ya = (y - mean) * jax.lax.rsqrt(var + 1e-5) * g_ref[...] + b_ref[...]
            h = jnp.where(ya > 0, ya, 0.2 * ya)                     # LeakyReLU(0.2)

        # seq_info output: the pre-final-conv features (lane-dense slab).
        info_ref[...] = h.astype(info_ref.dtype)
        # Final Conv2d(C_last, 1, kernel=side_last) == per-row dot product.
        # Done as a VPU multiply + cross-lane reduce; bias comes from SMEM.
        out_ref[...] = (jnp.sum(h * wf_ref[...], axis=-1, keepdims=True)
                        + bias_ref[0, 0]).astype(out_ref.dtype)
    return kernel


# ----------------------------------------------------------------------------
# Wrapper: returns (seq(x), seq_info(x)) exactly like the PyTorch Discriminator.
# ----------------------------------------------------------------------------
def discriminator_forward(x_nchw, block_params, final_params,
                          compute_dtype=jnp.float32):
    b, cin, hin, win = x_nchw.shape
    n_blocks = len(block_params)

    # ---- weight-only preprocessing (layout plumbing; no activation work) ----
    operands = []
    in_specs = []
    c_, h_, w_ = cin, hin, win
    for p in block_params:
        t, ho, wo = _conv_as_dense_matrix(p["w"], h_, w_)
        cout = p["w"].shape[0]
        f_in, f_out = c_ * h_ * w_, cout * ho * wo
        operands += [t.astype(compute_dtype),
                     p["gamma"].reshape(1, f_out).astype(jnp.float32),
                     p["beta"].reshape(1, f_out).astype(jnp.float32)]
        in_specs += [pl.BlockSpec((f_in, f_out), lambda i: (0, 0)),
                     pl.BlockSpec((1, f_out), lambda i: (0, 0)),
                     pl.BlockSpec((1, f_out), lambda i: (0, 0))]
        c_, h_, w_ = cout, ho, wo

    f_last = c_ * h_ * w_
    wf, bf = final_params
    operands += [wf.reshape(1, f_last).astype(jnp.float32),
                 bf.reshape(1, 1).astype(jnp.float32)]
    in_specs += [pl.BlockSpec((1, f_last), lambda i: (0, 0)),
                 pl.BlockSpec(memory_space=pltpu.MemorySpace.SMEM)]

    # ---- activations: CHW-flattened (pure reshape, no transpose), batch padded
    #      to a sublane-aligned multiple so every tile is (8, F) ----
    f0 = cin * hin * win
    bp = ((b + _BATCH_BLOCK - 1) // _BATCH_BLOCK) * _BATCH_BLOCK
    x_flat = jnp.pad(x_nchw.reshape(b, f0).astype(compute_dtype),
                     ((0, bp - b), (0, 0)))

    out, info = pl.pallas_call(
        _make_fused_kernel(n_blocks),
        out_shape=(jax.ShapeDtypeStruct((bp, 1), jnp.float32),
                   jax.ShapeDtypeStruct((bp, f_last), jnp.float32)),
        grid=(bp // _BATCH_BLOCK,),
        in_specs=[pl.BlockSpec((_BATCH_BLOCK, f0), lambda i: (i, 0))] + in_specs,
        out_specs=(pl.BlockSpec((_BATCH_BLOCK, 1), lambda i: (i, 0)),
                   pl.BlockSpec((_BATCH_BLOCK, f_last), lambda i: (i, 0))),
        compiler_params=pltpu.CompilerParams(
            dimension_semantics=("parallel",)),   # v7x: batch blocks split across 2 TCs
    )(x_flat, *operands)

    out = out[:b].reshape(b, 1, 1, 1)
    info = info[:b].reshape(b, c_, h_, w_)
    return out, info


# ----------------------------------------------------------------------------
# Deterministic parameter construction (mirrors determine_layers_disc)
# ----------------------------------------------------------------------------
def make_params(key, side, num_channels):
    layer_dims = [(1, side), (num_channels, side // 2)]
    while layer_dims[-1][1] > 3 and len(layer_dims) < 4:
        layer_dims.append((layer_dims[-1][0] * 2, layer_dims[-1][1] // 2))
    blocks = []
    for (cin, _sin), (cout, sout) in zip(layer_dims, layer_dims[1:]):
        key, k1, k2, k3 = jax.random.split(key, 4)
        blocks.append(dict(
            w=0.1 * jax.random.normal(k1, (cout, cin, 4, 4), jnp.float32),
            gamma=1.0 + 0.1 * jax.random.normal(k2, (cout, sout, sout), jnp.float32),
            beta=0.1 * jax.random.normal(k3, (cout, sout, sout), jnp.float32),
        ))
    key, k1, k2 = jax.random.split(key, 3)
    c_last, s_last = layer_dims[-1]
    wf = 0.1 * jax.random.normal(k1, (1, c_last, s_last, s_last), jnp.float32)
    bf = 0.1 * jax.random.normal(k2, (1,), jnp.float32)
    return blocks, (wf, bf)


# ----------------------------------------------------------------------------
# Pure-JAX reference (mirrors the PyTorch ops) for the correctness check
# ----------------------------------------------------------------------------
def _ref_forward(x, block_params, final_params):
    feat = x
    for p in block_params:
        y = jax.lax.conv_general_dilated(
            feat, p["w"], (2, 2), [(1, 1), (1, 1)],
            dimension_numbers=("NCHW", "OIHW", "NCHW"))
        mean = y.mean(axis=(1, 2, 3), keepdims=True)
        var = ((y - mean) ** 2).mean(axis=(1, 2, 3), keepdims=True)
        y = (y - mean) / jnp.sqrt(var + 1e-5) * p["gamma"][None] + p["beta"][None]
        feat = jnp.where(y > 0, y, 0.2 * y)
    wf, bf = final_params
    out = jax.lax.conv_general_dilated(
        feat, wf, (1, 1), [(0, 0), (0, 0)],
        dimension_numbers=("NCHW", "OIHW", "NCHW")) + bf.reshape(1, 1, 1, 1)
    return out, feat


if __name__ == "__main__":
    key = jax.random.PRNGKey(0)
    B, side, num_channels = 2, 16, 4
    key, kx, kp = jax.random.split(key, 3)
    x = jax.random.normal(kx, (B, 1, side, side), jnp.float32)   # NCHW, like PyTorch

    block_params, final_params = make_params(kp, side, num_channels)

    fwd = jax.jit(discriminator_forward)
    out, info = fwd(x, block_params, final_params)
    out, info = jax.block_until_ready((out, info))

    assert out.shape == (B, 1, 1, 1), out.shape
    assert info.shape == (B, 16, 2, 2), info.shape

    ref_out, ref_info = _ref_forward(x, block_params, final_params)
    max_err = max(float(jnp.max(jnp.abs(out - ref_out))),
                  float(jnp.max(jnp.abs(info - ref_info))))
    assert max_err < 1e-3, f"mismatch vs reference: {max_err}"

    print("KERNEL_OK")
</pallas_src>

<mosaic_0001>
module attributes {stable_mosaic.version = 11 : i64} {
  func.func @kernel(%arg0: i32, %arg1: memref<8x256xf32, #tpu.memory_space<vmem>>, %arg2: memref<256x256xf32, #tpu.memory_space<vmem>>, %arg3: memref<1x256xf32, #tpu.memory_space<vmem>>, %arg4: memref<1x256xf32, #tpu.memory_space<vmem>>, %arg5: memref<256x128xf32, #tpu.memory_space<vmem>>, %arg6: memref<1x128xf32, #tpu.memory_space<vmem>>, %arg7: memref<1x128xf32, #tpu.memory_space<vmem>>, %arg8: memref<128x64xf32, #tpu.memory_space<vmem>>, %arg9: memref<1x64xf32, #tpu.memory_space<vmem>>, %arg10: memref<1x64xf32, #tpu.memory_space<vmem>>, %arg11: memref<1x64xf32, #tpu.memory_space<vmem>>, %arg12: memref<1x1xf32, #tpu.memory_space<smem>>, %arg13: memref<8x1xf32, #tpu.memory_space<vmem>>, %arg14: memref<8x64xf32, #tpu.memory_space<vmem>>) attributes {dimension_semantics = [#tpu.dimension_semantics<parallel>], iteration_bounds = array<i64: 1>, scalar_prefetch = 0 : i64, scratch_operands = 0 : i64, tpu.core_type = #tpu.core_type<tc>, window_params = [{transform_indices = @transform_0, window_bounds = array<i64: 8, 256>}, {pipeline_mode = #tpu.pipeline_mode<synchronous>, transform_indices = @transform_1, window_bounds = array<i64: 256, 256>}, {pipeline_mode = #tpu.pipeline_mode<synchronous>, transform_indices = @transform_2, window_bounds = array<i64: 1, 256>}, {pipeline_mode = #tpu.pipeline_mode<synchronous>, transform_indices = @transform_3, window_bounds = array<i64: 1, 256>}, {pipeline_mode = #tpu.pipeline_mode<synchronous>, transform_indices = @transform_4, window_bounds = array<i64: 256, 128>}, {pipeline_mode = #tpu.pipeline_mode<synchronous>, transform_indices = @transform_5, window_bounds = array<i64: 1, 128>}, {pipeline_mode = #tpu.pipeline_mode<synchronous>, transform_indices = @transform_6, window_bounds = array<i64: 1, 128>}, {pipeline_mode = #tpu.pipeline_mode<synchronous>, transform_indices = @transform_7, window_bounds = array<i64: 128, 64>}, {pipeline_mode = #tpu.pipeline_mode<synchronous>, transform_indices = @transform_8, window_bounds = array<i64: 1, 64>}, {pipeline_mode = #tpu.pipeline_mode<synchronous>, transform_indices = @transform_9, window_bounds = array<i64: 1, 64>}, {pipeline_mode = #tpu.pipeline_mode<synchronous>, transform_indices = @transform_10, window_bounds = array<i64: 1, 64>}, {transform_indices = @transform_11, window_bounds = array<i64: 1, 1>}, {transform_indices = @transform_12, window_bounds = array<i64: 8, 1>}, {transform_indices = @transform_13, window_bounds = array<i64: 8, 64>}]} {
    %c0 = arith.constant 0 : index
    %c0_0 = arith.constant 0 : index
    %0 = vector.load %arg1[%c0, %c0_0] : memref<8x256xf32, #tpu.memory_space<vmem>>, vector<8x256xf32>
    %c0_1 = arith.constant 0 : index
    %c0_2 = arith.constant 0 : index
    %1 = vector.load %arg2[%c0_1, %c0_2] : memref<256x256xf32, #tpu.memory_space<vmem>>, vector<256x256xf32>
    %cst = arith.constant dense<0.000000e+00> : vector<8x256xf32>
    %2 = tpu.matmul %0, %1, %cst {dimension_numbers = #tpu.dot_dimension_numbers<[1], [0], [0], [1], [0, 0, 1, 1], [], []>} : vector<8x256xf32>, vector<256x256xf32>, vector<8x256xf32> -> vector<8x256xf32>
    %cst_3 = arith.constant dense<0.000000e+00> : vector<8xf32>
    %3 = vector.multi_reduction <add>, %2, %cst_3 [1] : vector<8x256xf32> to vector<8xf32>
    %4 = vector.shape_cast %3 : vector<8xf32> to vector<8x1xf32>
    %cst_4 = arith.constant 2.560000e+02 : f32
    %5 = vector.broadcast %cst_4 : f32 to vector<8x1xf32>
    %6 = arith.divf %4, %5 : vector<8x1xf32>
    %7 = vector.broadcast %6 : vector<8x1xf32> to vector<8x256xf32>
    %8 = arith.subf %2, %7 : vector<8x256xf32>
    %9 = arith.mulf %8, %8 : vector<8x256xf32>
    %cst_5 = arith.constant dense<0.000000e+00> : vector<8xf32>
    %10 = vector.multi_reduction <add>, %9, %cst_5 [1] : vector<8x256xf32> to vector<8xf32>
    %11 = vector.shape_cast %10 : vector<8xf32> to vector<8x1xf32>
    %cst_6 = arith.constant 2.560000e+02 : f32
    %12 = vector.broadcast %cst_6 : f32 to vector<8x1xf32>
    %13 = arith.divf %11, %12 : vector<8x1xf32>
    %14 = vector.broadcast %6 : vector<8x1xf32> to vector<8x256xf32>
    %15 = arith.subf %2, %14 : vector<8x256xf32>
    %cst_7 = arith.constant 9.99999974E-6 : f32
    %16 = vector.broadcast %cst_7 : f32 to vector<8x1xf32>
    %17 = arith.addf %13, %16 : vector<8x1xf32>
    %18 = math.rsqrt %17 : vector<8x1xf32>
    %19 = vector.broadcast %18 : vector<8x1xf32> to vector<8x256xf32>
    %20 = arith.mulf %15, %19 : vector<8x256xf32>
    %c0_8 = arith.constant 0 : index
    %c0_9 = arith.constant 0 : index
    %21 = vector.load %arg3[%c0_8, %c0_9] : memref<1x256xf32, #tpu.memory_space<vmem>>, vector<1x256xf32>
    %22 = vector.broadcast %21 : vector<1x256xf32> to vector<8x256xf32>
    %23 = arith.mulf %20, %22 : vector<8x256xf32>
    %c0_10 = arith.constant 0 : index
    %c0_11 = arith.constant 0 : index
    %24 = vector.load %arg4[%c0_10, %c0_11] : memref<1x256xf32, #tpu.memory_space<vmem>>, vector<1x256xf32>
    %25 = vector.broadcast %24 : vector<1x256xf32> to vector<8x256xf32>
    %26 = arith.addf %23, %25 : vector<8x256xf32>
    %cst_12 = arith.constant 0.000000e+00 : f32
    %27 = vector.broadcast %cst_12 : f32 to vector<8x256xf32>
    %28 = arith.cmpf ogt, %26, %27 : vector<8x256xf32>
    %cst_13 = arith.constant 2.000000e-01 : f32
    %29 = vector.broadcast %cst_13 : f32 to vector<8x256xf32>
    %30 = arith.mulf %29, %26 : vector<8x256xf32>
    %31 = arith.select %28, %26, %30 : vector<8x256xi1>, vector<8x256xf32>
    %c0_14 = arith.constant 0 : index
    %c0_15 = arith.constant 0 : index
    %32 = vector.load %arg5[%c0_14, %c0_15] : memref<256x128xf32, #tpu.memory_space<vmem>>, vector<256x128xf32>
    %cst_16 = arith.constant dense<0.000000e+00> : vector<8x128xf32>
    %33 = tpu.matmul %31, %32, %cst_16 {dimension_numbers = #tpu.dot_dimension_numbers<[1], [0], [0], [1], [0, 0, 1, 1], [], []>} : vector<8x256xf32>, vector<256x128xf32>, vector<8x128xf32> -> vector<8x128xf32>
    %cst_17 = arith.constant dense<0.000000e+00> : vector<8xf32>
    %34 = vector.multi_reduction <add>, %33, %cst_17 [1] : vector<8x128xf32> to vector<8xf32>
    %35 = vector.shape_cast %34 : vector<8xf32> to vector<8x1xf32>
    %cst_18 = arith.constant 1.280000e+02 : f32
    %36 = vector.broadcast %cst_18 : f32 to vector<8x1xf32>
    %37 = arith.divf %35, %36 : vector<8x1xf32>
    %38 = vector.broadcast %37 : vector<8x1xf32> to vector<8x128xf32>
    %39 = arith.subf %33, %38 : vector<8x128xf32>
    %40 = arith.mulf %39, %39 : vector<8x128xf32>
    %cst_19 = arith.constant dense<0.000000e+00> : vector<8xf32>
    %41 = vector.multi_reduction <add>, %40, %cst_19 [1] : vector<8x128xf32> to vector<8xf32>
    %42 = vector.shape_cast %41 : vector<8xf32> to vector<8x1xf32>
    %cst_20 = arith.constant 1.280000e+02 : f32
    %43 = vector.broadcast %cst_20 : f32 to vector<8x1xf32>
    %44 = arith.divf %42, %43 : vector<8x1xf32>
    %45 = vector.broadcast %37 : vector<8x1xf32> to vector<8x128xf32>
    %46 = arith.subf %33, %45 : vector<8x128xf32>
    %cst_21 = arith.constant 9.99999974E-6 : f32
    %47 = vector.broadcast %cst_21 : f32 to vector<8x1xf32>
    %48 = arith.addf %44, %47 : vector<8x1xf32>
    %49 = math.rsqrt %48 : vector<8x1xf32>
    %50 = vector.broadcast %49 : vector<8x1xf32> to vector<8x128xf32>
    %51 = arith.mulf %46, %50 : vector<8x128xf32>
    %c0_22 = arith.constant 0 : index
    %c0_23 = arith.constant 0 : index
    %52 = vector.load %arg6[%c0_22, %c0_23] : memref<1x128xf32, #tpu.memory_space<vmem>>, vector<1x128xf32>
    %53 = vector.broadcast %52 : vector<1x128xf32> to vector<8x128xf32>
    %54 = arith.mulf %51, %53 : vector<8x128xf32>
    %c0_24 = arith.constant 0 : index
    %c0_25 = arith.constant 0 : index
    %55 = vector.load %arg7[%c0_24, %c0_25] : memref<1x128xf32, #tpu.memory_space<vmem>>, vector<1x128xf32>
    %56 = vector.broadcast %55 : vector<1x128xf32> to vector<8x128xf32>
    %57 = arith.addf %54, %56 : vector<8x128xf32>
    %cst_26 = arith.constant 0.000000e+00 : f32
    %58 = vector.broadcast %cst_26 : f32 to vector<8x128xf32>
    %59 = arith.cmpf ogt, %57, %58 : vector<8x128xf32>
    %cst_27 = arith.constant 2.000000e-01 : f32
    %60 = vector.broadcast %cst_27 : f32 to vector<8x128xf32>
    %61 = arith.mulf %60, %57 : vector<8x128xf32>
    %62 = arith.select %59, %57, %61 : vector<8x128xi1>, vector<8x128xf32>
    %c0_28 = arith.constant 0 : index
    %c0_29 = arith.constant 0 : index
    %63 = vector.load %arg8[%c0_28, %c0_29] : memref<128x64xf32, #tpu.memory_space<vmem>>, vector<128x64xf32>
    %cst_30 = arith.constant dense<0.000000e+00> : vector<8x64xf32>
    %64 = tpu.matmul %62, %63, %cst_30 {dimension_numbers = #tpu.dot_dimension_numbers<[1], [0], [0], [1], [0, 0, 1, 1], [], []>} : vector<8x128xf32>, vector<128x64xf32>, vector<8x64xf32> -> vector<8x64xf32>
    %cst_31 = arith.constant dense<0.000000e+00> : vector<8xf32>
    %65 = vector.multi_reduction <add>, %64, %cst_31 [1] : vector<8x64xf32> to vector<8xf32>
    %66 = vector.shape_cast %65 : vector<8xf32> to vector<8x1xf32>
    %cst_32 = arith.constant 6.400000e+01 : f32
    %67 = vector.broadcast %cst_32 : f32 to vector<8x1xf32>
    %68 = arith.divf %66, %67 : vector<8x1xf32>
    %69 = vector.broadcast %68 : vector<8x1xf32> to vector<8x64xf32>
    %70 = arith.subf %64, %69 : vector<8x64xf32>
    %71 = arith.mulf %70, %70 : vector<8x64xf32>
    %cst_33 = arith.constant dense<0.000000e+00> : vector<8xf32>
    %72 = vector.multi_reduction <add>, %71, %cst_33 [1] : vector<8x64xf32> to vector<8xf32>
    %73 = vector.shape_cast %72 : vector<8xf32> to vector<8x1xf32>
    %cst_34 = arith.constant 6.400000e+01 : f32
    %74 = vector.broadcast %cst_34 : f32 to vector<8x1xf32>
    %75 = arith.divf %73, %74 : vector<8x1xf32>
    %76 = vector.broadcast %68 : vector<8x1xf32> to vector<8x64xf32>
    %77 = arith.subf %64, %76 : vector<8x64xf32>
    %cst_35 = arith.constant 9.99999974E-6 : f32
    %78 = vector.broadcast %cst_35 : f32 to vector<8x1xf32>
    %79 = arith.addf %75, %78 : vector<8x1xf32>
    %80 = math.rsqrt %79 : vector<8x1xf32>
    %81 = vector.broadcast %80 : vector<8x1xf32> to vector<8x64xf32>
    %82 = arith.mulf %77, %81 : vector<8x64xf32>
    %c0_36 = arith.constant 0 : index
    %c0_37 = arith.constant 0 : index
    %83 = vector.load %arg9[%c0_36, %c0_37] : memref<1x64xf32, #tpu.memory_space<vmem>>, vector<1x64xf32>
    %84 = vector.broadcast %83 : vector<1x64xf32> to vector<8x64xf32>
    %85 = arith.mulf %82, %84 : vector<8x64xf32>
    %c0_38 = arith.constant 0 : index
    %c0_39 = arith.constant 0 : index
    %86 = vector.load %arg10[%c0_38, %c0_39] : memref<1x64xf32, #tpu.memory_space<vmem>>, vector<1x64xf32>
    %87 = vector.broadcast %86 : vector<1x64xf32> to vector<8x64xf32>
    %88 = arith.addf %85, %87 : vector<8x64xf32>
    %cst_40 = arith.constant 0.000000e+00 : f32
    %89 = vector.broadcast %cst_40 : f32 to vector<8x64xf32>
    %90 = arith.cmpf ogt, %88, %89 : vector<8x64xf32>
    %cst_41 = arith.constant 2.000000e-01 : f32
    %91 = vector.broadcast %cst_41 : f32 to vector<8x64xf32>
    %92 = arith.mulf %91, %88 : vector<8x64xf32>
    %93 = arith.select %90, %88, %92 : vector<8x64xi1>, vector<8x64xf32>
    %c0_42 = arith.constant 0 : index
    %c0_43 = arith.constant 0 : index
    %94 = vector.load %arg14[%c0_42, %c0_43] : memref<8x64xf32, #tpu.memory_space<vmem>>, vector<8x64xf32>
    tpu.vector_store %arg14[%c0_42, %c0_43], %93 {strides = array<i32>} : memref<8x64xf32, #tpu.memory_space<vmem>>, vector<8x64xf32>,
    %c0_44 = arith.constant 0 : index
    %c0_45 = arith.constant 0 : index
    %95 = vector.load %arg11[%c0_44, %c0_45] : memref<1x64xf32, #tpu.memory_space<vmem>>, vector<1x64xf32>
    %96 = vector.broadcast %95 : vector<1x64xf32> to vector<8x64xf32>
    %97 = arith.mulf %93, %96 : vector<8x64xf32>
    %cst_46 = arith.constant dense<0.000000e+00> : vector<8xf32>
    %98 = vector.multi_reduction <add>, %97, %cst_46 [1] : vector<8x64xf32> to vector<8xf32>
    %99 = vector.shape_cast %98 : vector<8xf32> to vector<8x1xf32>
    %c0_47 = arith.constant 0 : index
    %c0_48 = arith.constant 0 : index
    %100 = memref.load %arg12[%c0_47, %c0_48] : memref<1x1xf32, #tpu.memory_space<smem>>
    %101 = vector.broadcast %100 : f32 to vector<8x1xf32>
    %102 = arith.addf %99, %101 : vector<8x1xf32>
    %c0_49 = arith.constant 0 : index
    %c0_50 = arith.constant 0 : index
    %103 = vector.load %arg13[%c0_49, %c0_50] : memref<8x1xf32, #tpu.memory_space<vmem>>, vector<8x1xf32>
    tpu.vector_store %arg13[%c0_49, %c0_50], %102 {strides = array<i32>} : memref<8x1xf32, #tpu.memory_space<vmem>>, vector<8x1xf32>,
    return
  }
  func.func @transform_0(%arg0: i32) -> (i32, i32) {
    %c0_i32 = arith.constant 0 : i32
    %c0_i32_0 = arith.constant 0 : i32
    return %arg0, %c0_i32 : i32, i32
  }
  func.func @transform_1(%arg0: i32) -> (i32, i32) {
    %c0_i32 = arith.constant 0 : i32
    %c0_i32_0 = arith.constant 0 : i32
    %c0_i32_1 = arith.constant 0 : i32
    return %c0_i32, %c0_i32_0 : i32, i32
  }
  func.func @transform_2(%arg0: i32) -> (i32, i32) {
    %c0_i32 = arith.constant 0 : i32
    %c0_i32_0 = arith.constant 0 : i32
    %c0_i32_1 = arith.constant 0 : i32
    return %c0_i32, %c0_i32_0 : i32, i32
  }
  func.func @transform_3(%arg0: i32) -> (i32, i32) {
    %c0_i32 = arith.constant 0 : i32
    %c0_i32_0 = arith.constant 0 : i32
    %c0_i32_1 = arith.constant 0 : i32
    return %c0_i32, %c0_i32_0 : i32, i32
  }
  func.func @transform_4(%arg0: i32) -> (i32, i32) {
    %c0_i32 = arith.constant 0 : i32
    %c0_i32_0 = arith.constant 0 : i32
    %c0_i32_1 = arith.constant 0 : i32
    return %c0_i32, %c0_i32_0 : i32, i32
  }
  func.func @transform_5(%arg0: i32) -> (i32, i32) {
    %c0_i32 = arith.constant 0 : i32
    %c0_i32_0 = arith.constant 0 : i32
    %c0_i32_1 = arith.constant 0 : i32
    return %c0_i32, %c0_i32_0 : i32, i32
  }
  func.func @transform_6(%arg0: i32) -> (i32, i32) {
    %c0_i32 = arith.constant 0 : i32
    %c0_i32_0 = arith.constant 0 : i32
    %c0_i32_1 = arith.constant 0 : i32
    return %c0_i32, %c0_i32_0 : i32, i32
  }
  func.func @transform_7(%arg0: i32) -> (i32, i32) {
    %c0_i32 = arith.constant 0 : i32
    %c0_i32_0 = arith.constant 0 : i32
    %c0_i32_1 = arith.constant 0 : i32
    return %c0_i32, %c0_i32_0 : i32, i32
  }
  func.func @transform_8(%arg0: i32) -> (i32, i32) {
    %c0_i32 = arith.constant 0 : i32
    %c0_i32_0 = arith.constant 0 : i32
    %c0_i32_1 = arith.constant 0 : i32
    return %c0_i32, %c0_i32_0 : i32, i32
  }
  func.func @transform_9(%arg0: i32) -> (i32, i32) {
    %c0_i32 = arith.constant 0 : i32
    %c0_i32_0 = arith.constant 0 : i32
    %c0_i32_1 = arith.constant 0 : i32
    return %c0_i32, %c0_i32_0 : i32, i32
  }
  func.func @transform_10(%arg0: i32) -> (i32, i32) {
    %c0_i32 = arith.constant 0 : i32
    %c0_i32_0 = arith.constant 0 : i32
    %c0_i32_1 = arith.constant 0 : i32
    return %c0_i32, %c0_i32_0 : i32, i32
  }
  func.func @transform_11(%arg0: i32) -> (i32, i32) {
    %c0_i32 = arith.constant 0 : i32
    %c0_i32_0 = arith.constant 0 : i32
    %c0_i32_1 = arith.constant 0 : i32
    return %c0_i32, %c0_i32_0 : i32, i32
  }
  func.func @transform_12(%arg0: i32) -> (i32, i32) {
    %c0_i32 = arith.constant 0 : i32
    %c0_i32_0 = arith.constant 0 : i32
    return %arg0, %c0_i32 : i32, i32
  }
  func.func @transform_13(%arg0: i32) -> (i32, i32) {
    %c0_i32 = arith.constant 0 : i32
    %c0_i32_0 = arith.constant 0 : i32
    return %arg0, %c0_i32 : i32, i32
  }
}

</mosaic_0001>

<llo_original>
// kernel: discriminator_forward.1
$region0: #{discriminator_forward.1}
  #allocation0 [shape = 'u32[]', space=smem, size = 0x4, offset = 0x4, fixed_abs, tag = 'smem constant byte address 0x4 - core index']
  #allocation1 [shape = 'u32[144,128]{1,0:T(1,128)}', space=vmem, size = 0x12000, scoped, tag = 'internal scratch']
  #allocation2 [shape = 'f32[1,1]{1,0:T(1,128)S(6)}', space=smem, size = 0x200, scoped, tag = 'scoped memory for discriminator_forward.1']
  %s0 = inlined_call_operand.vmem [shape: f32[8,256], index: 0, kind: input, shape index: {}]
  %s1 = inlined_call_operand.vmem [shape: f32[256,256], index: 1, kind: input, shape index: {}]
  %s2 = inlined_call_operand.vmem [shape: f32[1,256], index: 2, kind: input, shape index: {}]
  %s3 = inlined_call_operand.vmem [shape: f32[1,256], index: 3, kind: input, shape index: {}]
  %s4 = inlined_call_operand.vmem [shape: f32[256,128], index: 4, kind: input, shape index: {}]
  %s5 = inlined_call_operand.vmem [shape: f32[1,128], index: 5, kind: input, shape index: {}]
  %s6 = inlined_call_operand.vmem [shape: f32[1,128], index: 6, kind: input, shape index: {}]
  %s7 = inlined_call_operand.vmem [shape: f32[128,64], index: 7, kind: input, shape index: {}]
  %s8 = inlined_call_operand.vmem [shape: f32[1,64], index: 8, kind: input, shape index: {}]
  %s9 = inlined_call_operand.vmem [shape: f32[1,64], index: 9, kind: input, shape index: {}]
  %s10 = inlined_call_operand.vmem [shape: f32[1,64], index: 10, kind: input, shape index: {}]
  %s11 = inlined_call_operand.<no memory space> [shape: f32[1,1], index: 11, kind: input, shape index: {}]
  %s12 = inlined_call_operand.vmem [shape: f32[8,1], index: 12, kind: output, shape index: {0}]
  %s13 = inlined_call_operand.vmem [shape: f32[8,64], index: 13, kind: output, shape index: {1}]
  %14 = xla_tuple %s12, %s13
  %s15 = sld [smem:[#allocation0]]
  $region66: #{discriminator_forward.1} parent=0
    _
  %s17 = ssub.s32 1, %s15
  %s18 = scalar_select 0, %s17, %s15
  %19 = sst [smem:[#allocation2]] %s11
  // Predicated region
  $region2: #{discriminator_forward.1} parent=0 // pred_check
    _
  $region3: #{discriminator_forward.1} parent=0 // pred_check_branch
    %21 = sbr.rel (0) target = $region5
  $region4: #{discriminator_forward.1} parent=0 // pred_region
    _
  $region5: #{discriminator_forward.1} parent=0 // pred_fallthru
    _
  // Predicated region
  $region6: #{discriminator_forward.1} parent=0 // pred_check
    _
  $region7: #{discriminator_forward.1} parent=0 // pred_check_branch
    %23 = sbr.rel (0) target = $region9
  $region8: #{discriminator_forward.1} parent=0 // pred_region
    _
  $region9: #{discriminator_forward.1} parent=0 // pred_fallthru
    _
  // Predicated region
  $region10: #{discriminator_forward.1} parent=0 // pred_check
    _
  $region11: #{discriminator_forward.1} parent=0 // pred_check_branch
    %25 = sbr.rel (0) target = $region13
  $region12: #{discriminator_forward.1} parent=0 // pred_region
    _
  $region13: #{discriminator_forward.1} parent=0 // pred_fallthru
    _
  // Predicated region
  $region14: #{discriminator_forward.1} parent=0 // pred_check
    _
  $region15: #{discriminator_forward.1} parent=0 // pred_check_branch
    %27 = sbr.rel (0) target = $region17
  $region16: #{discriminator_forward.1} parent=0 // pred_region
    _
  $region17: #{discriminator_forward.1} parent=0 // pred_fallthru
    _
  // Predicated region
  $region18: #{discriminator_forward.1} parent=0 // pred_check
    _
  $region19: #{discriminator_forward.1} parent=0 // pred_check_branch
    %29 = sbr.rel (0) target = $region21
  $region20: #{discriminator_forward.1} parent=0 // pred_region
    _
  $region21: #{discriminator_forward.1} parent=0 // pred_fallthru
    _
  // Predicated region
  $region22: #{discriminator_forward.1} parent=0 // pred_check
    _
  $region23: #{discriminator_forward.1} parent=0 // pred_check_branch
    %31 = sbr.rel (0) target = $region25
  $region24: #{discriminator_forward.1} parent=0 // pred_region
    _
  $region25: #{discriminator_forward.1} parent=0 // pred_fallthru
    _
  // Predicated region
  $region26: #{discriminator_forward.1} parent=0 // pred_check
    _
  $region27: #{discriminator_forward.1} parent=0 // pred_check_branch
    %33 = sbr.rel (0) target = $region29
  $region28: #{discriminator_forward.1} parent=0 // pred_region
    _
  $region29: #{discriminator_forward.1} parent=0 // pred_fallthru
    _
  // Predicated region
  $region30: #{discriminator_forward.1} parent=0 // pred_check
    _
  $region31: #{discriminator_forward.1} parent=0 // pred_check_branch
    %35 = sbr.rel (0) target = $region33
  $region32: #{discriminator_forward.1} parent=0 // pred_region
    _
  $region33: #{discriminator_forward.1} parent=0 // pred_fallthru
    _
  // Predicated region
  $region34: #{discriminator_forward.1} parent=0 // pred_check
    _
  $region35: #{discriminator_forward.1} parent=0 // pred_check_branch
    %37 = sbr.rel (0) target = $region37
  $region36: #{discriminator_forward.1} parent=0 // pred_region
    _
  $region37: #{discriminator_forward.1} parent=0 // pred_fallthru
    _
  // Predicated region
  $region38: #{discriminator_forward.1} parent=0 // pred_check
    _
  $region39: #{discriminator_forward.1} parent=0 // pred_check_branch
    %39 = sbr.rel (0) target = $region41
  $region40: #{discriminator_forward.1} parent=0 // pred_region
    _
  $region41: #{discriminator_forward.1} parent=0 // pred_fallthru
    _
  // Predicated region
  $region42: #{discriminator_forward.1} parent=0 // pred_check
    _
  $region43: #{discriminator_forward.1} parent=0 // pred_check_branch
    %41 = sbr.rel (0) target = $region45
  $region44: #{discriminator_forward.1} parent=0 // pred_region
    _
  $region45: #{discriminator_forward.1} parent=0 // pred_fallthru
    _
  // Predicated region
  $region46: #{discriminator_forward.1} parent=0 // pred_check
    _
  $region47: #{discriminator_forward.1} parent=0 // pred_check_branch
    %43 = sbr.rel (0) target = $region49
  $region48: #{discriminator_forward.1} parent=0 // pred_region
    _
  $region49: #{discriminator_forward.1} parent=0 // pred_fallthru
    _
  %v44 = vld [vmem:[%s0] sm:$0xff]
  %v45 = vld [vmem:[%s0 + $0x8] sm:$0xff]
  %v46 = vld [vmem:[%s1] sm:$0xff]
  %v47 = vld [vmem:[%s1 + $0x8] sm:$0xff]
  %v48 = vld [vmem:[%s1 + $0x10] sm:$0xff]
  %v49 = vld [vmem:[%s1 + $0x18] sm:$0xff]
  %v50 = vld [vmem:[%s1 + $0x20] sm:$0xff]
  %v51 = vld [vmem:[%s1 + $0x28] sm:$0xff]
  %v52 = vld [vmem:[%s1 + $0x30] sm:$0xff]
  %v53 = vld [vmem:[%s1 + $0x38] sm:$0xff]
  %v54 = vld [vmem:[%s1 + $0x40] sm:$0xff]
  %v55 = vld [vmem:[%s1 + $0x48] sm:$0xff]
  %v56 = vld [vmem:[%s1 + $0x50] sm:$0xff]
  %v57 = vld [vmem:[%s1 + $0x58] sm:$0xff]
  %v58 = vld [vmem:[%s1 + $0x60] sm:$0xff]
  %v59 = vld [vmem:[%s1 + $0x68] sm:$0xff]
  %v60 = vld [vmem:[%s1 + $0x70] sm:$0xff]
  %v61 = vld [vmem:[%s1 + $0x78] sm:$0xff]
  %v62 = vld [vmem:[%s1 + $0x80] sm:$0xff]
  %v63 = vld [vmem:[%s1 + $0x88] sm:$0xff]
  %v64 = vld [vmem:[%s1 + $0x90] sm:$0xff]
  %v65 = vld [vmem:[%s1 + $0x98] sm:$0xff]
  %v66 = vld [vmem:[%s1 + $0xa0] sm:$0xff]
  %v67 = vld [vmem:[%s1 + $0xa8] sm:$0xff]
  %v68 = vld [vmem:[%s1 + $0xb0] sm:$0xff]
  %v69 = vld [vmem:[%s1 + $0xb8] sm:$0xff]
  %v70 = vld [vmem:[%s1 + $0xc0] sm:$0xff]
  %v71 = vld [vmem:[%s1 + $0xc8] sm:$0xff]
  %v72 = vld [vmem:[%s1 + $0xd0] sm:$0xff]
  %v73 = vld [vmem:[%s1 + $0xd8] sm:$0xff]
  %v74 = vld [vmem:[%s1 + $0xe0] sm:$0xff]
  %v75 = vld [vmem:[%s1 + $0xe8] sm:$0xff]
  %v76 = vld [vmem:[%s1 + $0xf0] sm:$0xff]
  %v77 = vld [vmem:[%s1 + $0xf8] sm:$0xff]
  %v78 = vld [vmem:[%s1 + $0x100] sm:$0xff]
  %v79 = vld [vmem:[%s1 + $0x108] sm:$0xff]
  %v80 = vld [vmem:[%s1 + $0x110] sm:$0xff]
  %v81 = vld [vmem:[%s1 + $0x118] sm:$0xff]
  %v82 = vld [vmem:[%s1 + $0x120] sm:$0xff]
  %v83 = vld [vmem:[%s1 + $0x128] sm:$0xff]
  %v84 = vld [vmem:[%s1 + $0x130] sm:$0xff]
  %v85 = vld [vmem:[%s1 + $0x138] sm:$0xff]
  %v86 = vld [vmem:[%s1 + $0x140] sm:$0xff]
  %v87 = vld [vmem:[%s1 + $0x148] sm:$0xff]
  %v88 = vld [vmem:[%s1 + $0x150] sm:$0xff]
  %v89 = vld [vmem:[%s1 + $0x158] sm:$0xff]
  %v90 = vld [vmem:[%s1 + $0x160] sm:$0xff]
  %v91 = vld [vmem:[%s1 + $0x168] sm:$0xff]
  %v92 = vld [vmem:[%s1 + $0x170] sm:$0xff]
  %v93 = vld [vmem:[%s1 + $0x178] sm:$0xff]
  %v94 = vld [vmem:[%s1 + $0x180] sm:$0xff]
  %v95 = vld [vmem:[%s1 + $0x188] sm:$0xff]
  %v96 = vld [vmem:[%s1 + $0x190] sm:$0xff]
  %v97 = vld [vmem:[%s1 + $0x198] sm:$0xff]
  %v98 = vld [vmem:[%s1 + $0x1a0] sm:$0xff]
  %v99 = vld [vmem:[%s1 + $0x1a8] sm:$0xff]
  %v100 = vld [vmem:[%s1 + $0x1b0] sm:$0xff]
  %v101 = vld [vmem:[%s1 + $0x1b8] sm:$0xff]
  %v102 = vld [vmem:[%s1 + $0x1c0] sm:$0xff]
  %v103 = vld [vmem:[%s1 + $0x1c8] sm:$0xff]
  %v104 = vld [vmem:[%s1 + $0x1d0] sm:$0xff]
  %v105 = vld [vmem:[%s1 + $0x1d8] sm:$0xff]
  %v106 = vld [vmem:[%s1 + $0x1e0] sm:$0xff]
  %v107 = vld [vmem:[%s1 + $0x1e8] sm:$0xff]
  %v108 = vld [vmem:[%s1 + $0x1f0] sm:$0xff]
  %v109 = vld [vmem:[%s1 + $0x1f8] sm:$0xff]
  %110 = vmatprep.subr.mxu0 %v47
  %111 = vmatpush1.msra.mxu0 %v46
  %112 = vmatprep.subr.mxu0 %v49
  %113 = vmatpush1.msra.mxu0 %v48
  %114 = vmatprep.subr.mxu0 %v51
  %115 = vmatpush1.msra.mxu0 %v50
  %116 = vmatprep.subr.mxu0 %v53
  %117 = vmatpush1.msra.mxu0 %v52
  %118 = vmatprep.subr.mxu0 %v55
  %119 = vmatpush1.msra.mxu0 %v54
  %120 = vmatprep.subr.mxu0 %v57
  %121 = vmatpush1.msra.mxu0 %v56
  %122 = vmatprep.subr.mxu0 %v59
  %123 = vmatpush1.msra.mxu0 %v58
  %124 = vmatprep.subr.mxu0 %v61
  %125 = vmatpush1.msra.mxu0 %v60
  %126 = vmatprep.subr.mxu0 %v63
  %127 = vmatpush1.msra.mxu0 %v62
  %128 = vmatprep.subr.mxu0 %v65
  %129 = vmatpush1.msra.mxu0 %v64
  %130 = vmatprep.subr.mxu0 %v67
  %131 = vmatpush1.msra.mxu0 %v66
  %132 = vmatprep.subr.mxu0 %v69
  %133 = vmatpush1.msra.mxu0 %v68
  %134 = vmatprep.subr.mxu0 %v71
  %135 = vmatpush1.msra.mxu0 %v70
  %136 = vmatprep.subr.mxu0 %v73
  %137 = vmatpush1.msra.mxu0 %v72
  %138 = vmatprep.subr.mxu0 %v75
  %139 = vmatpush1.msra.mxu0 %v74
  %140 = vmatprep.subr.mxu0 %v77
  %141 = vmatpush1.msra.mxu0 %v76
  %142 = vmatprep.subr.mxu0 %v79
  %143 = vmatpush1.msra.mxu0 %v78
  %144 = vmatprep.subr.mxu0 %v81
  %145 = vmatpush1.msra.mxu0 %v80
  %146 = vmatprep.subr.mxu0 %v83
  %147 = vmatpush1.msra.mxu0 %v82
  %148 = vmatprep.subr.mxu0 %v85
  %149 = vmatpush1.msra.mxu0 %v84
  %150 = vmatprep.subr.mxu0 %v87
  %151 = vmatpush1.msra.mxu0 %v86
  %152 = vmatprep.subr.mxu0 %v89
  %153 = vmatpush1.msra.mxu0 %v88
  %154 = vmatprep.subr.mxu0 %v91
  %155 = vmatpush1.msra.mxu0 %v90
  %156 = vmatprep.subr.mxu0 %v93
  %157 = vmatpush1.msra.mxu0 %v92
  %158 = vmatprep.subr.mxu0 %v95
  %159 = vmatpush1.msra.mxu0 %v94
  %160 = vmatprep.subr.mxu0 %v97
  %161 = vmatpush1.msra.mxu0 %v96
  %162 = vmatprep.subr.mxu0 %v99
  %163 = vmatpush1.msra.mxu0 %v98
  %164 = vmatprep.subr.mxu0 %v101
  %165 = vmatpush1.msra.mxu0 %v100
  %166 = vmatprep.subr.mxu0 %v103
  %167 = vmatpush1.msra.mxu0 %v102
  %168 = vmatprep.subr.mxu0 %v105
  %169 = vmatpush1.msra.mxu0 %v104
  %170 = vmatprep.subr.mxu0 %v107
  %171 = vmatpush1.msra.mxu0 %v106
  %172 = vmatprep.subr.mxu0 %v109
  %173 = vmatpush1.msra.mxu0 %v108
  %174 = vmatprep.mubr.f32.mxu0 %v45
  %175 = vmatmul.mubr.f32.gmra.mrb[0].mxu0 %v44
  %v176 = vpop.f32.mrb[0].mxu0
  %v177 = vadd.f32 0.0, %v176
  %v178 = vpop.f32.mrb[0].mxu0
  %v179 = vadd.f32 0.0, %v178
  %180 = vdwg.mxu0
  %v181 = vadd.f32 %v177, %v179
  %182 = vadd.xlane.f32.xlu0 %v181
  %v183 = vpop.xlane.xlu0 %182
  %v184 = vrcp.pop 256.0
  %v185 = vmul.f32 %v183, %v184
  %v186 = vsub.f32 %v177, %v185
  %v187 = vsub.f32 %v179, %v185
  %v188 = vmul.f32 %v186, %v186
  %v189 = vmul.f32 %v187, %v187
  %v190 = vadd.f32 %v188, %v189
  %191 = vadd.xlane.f32.xlu0 %v190
  %v192 = vpop.xlane.xlu0 %191
  %v193 = vmul.f32 %v192, %v184
  %v194 = vadd.f32 %v193, 1e-05
  %v195 = vrsqrt.pop %v194
  %v196 = vmul.f32 %v186, %v195
  %v197 = vmul.f32 %v187, %v195
  %v198 = vld [vmem:[%s2] sm:$0x3]
  %v200 = vlaneseq
  %v201 = vshrl.u32 %v200, 7
  %v202 = vsub.s32 0, %v201
  %v203 = vrot.slane %v198, %v202
  %v204 = vlaneseq
  %v205 = vshrl.u32 %v204, 7
  %v206 = vsub.s32 1, %v205
  %v207 = vrot.slane %v198, %v206
  %v210 = vmul.f32 %v196, %v203
  %v211 = vmul.f32 %v197, %v207
  %v212 = vld [vmem:[%s3] sm:$0x3]
  %v214 = vlaneseq
  %v215 = vshrl.u32 %v214, 7
  %v216 = vsub.s32 0, %v215
  %v217 = vrot.slane %v212, %v216
  %v218 = vlaneseq
  %v219 = vshrl.u32 %v218, 7
  %v220 = vsub.s32 1, %v219
  %v221 = vrot.slane %v212, %v220
  %v224 = vadd.f32 %v210, %v217
  %v225 = vadd.f32 %v211, %v221
  %vm226 = vcmp.gt.f32.partialorder %v224, 0.0
  %vm227 = vcmp.gt.f32.partialorder %v225, 0.0
  %v228 = vmul.f32 %v224, 0.2
  %v229 = vmul.f32 %v225, 0.2
  %v230 = vsel %vm226, %v224, %v228
  %v231 = vsel %vm227, %v225, %v229
  %v232 = vld [vmem:[%s4] sm:$0xff]
  %v233 = vld [vmem:[%s4 + $0x8] sm:$0xff]
  %v234 = vld [vmem:[%s4 + $0x10] sm:$0xff]
  %v235 = vld [vmem:[%s4 + $0x18] sm:$0xff]
  %v236 = vld [vmem:[%s4 + $0x20] sm:$0xff]
  %v237 = vld [vmem:[%s4 + $0x28] sm:$0xff]
  %v238 = vld [vmem:[%s4 + $0x30] sm:$0xff]
  %v239 = vld [vmem:[%s4 + $0x38] sm:$0xff]
  %v240 = vld [vmem:[%s4 + $0x40] sm:$0xff]
  %v241 = vld [vmem:[%s4 + $0x48] sm:$0xff]
  %v242 = vld [vmem:[%s4 + $0x50] sm:$0xff]
  %v243 = vld [vmem:[%s4 + $0x58] sm:$0xff]
  %v244 = vld [vmem:[%s4 + $0x60] sm:$0xff]
  %v245 = vld [vmem:[%s4 + $0x68] sm:$0xff]
  %v246 = vld [vmem:[%s4 + $0x70] sm:$0xff]
  %v247 = vld [vmem:[%s4 + $0x78] sm:$0xff]
  %v248 = vld [vmem:[%s4 + $0x80] sm:$0xff]
  %v249 = vld [vmem:[%s4 + $0x88] sm:$0xff]
  %v250 = vld [vmem:[%s4 + $0x90] sm:$0xff]
  %v251 = vld [vmem:[%s4 + $0x98] sm:$0xff]
  %v252 = vld [vmem:[%s4 + $0xa0] sm:$0xff]
  %v253 = vld [vmem:[%s4 + $0xa8] sm:$0xff]
  %v254 = vld [vmem:[%s4 + $0xb0] sm:$0xff]
  %v255 = vld [vmem:[%s4 + $0xb8] sm:$0xff]
  %v256 = vld [vmem:[%s4 + $0xc0] sm:$0xff]
  %v257 = vld [vmem:[%s4 + $0xc8] sm:$0xff]
  %v258 = vld [vmem:[%s4 + $0xd0] sm:$0xff]
  %v259 = vld [vmem:[%s4 + $0xd8] sm:$0xff]
  %v260 = vld [vmem:[%s4 + $0xe0] sm:$0xff]
  %v261 = vld [vmem:[%s4 + $0xe8] sm:$0xff]
  %v262 = vld [vmem:[%s4 + $0xf0] sm:$0xff]
  %v263 = vld [vmem:[%s4 + $0xf8] sm:$0xff]
  %264 = vmatprep.subr.mxu0 0.0
  %265 = vmatpush1.msra.mxu0 %v232
  %266 = vmatprep.subr.mxu0 0.0
  %267 = vmatpush1.msra.mxu0 %v233
  %268 = vmatprep.subr.mxu0 0.0
  %269 = vmatpush1.msra.mxu0 %v234
  %270 = vmatprep.subr.mxu0 0.0
  %271 = vmatpush1.msra.mxu0 %v235
  %272 = vmatprep.subr.mxu0 0.0
  %273 = vmatpush1.msra.mxu0 %v236
  %274 = vmatprep.subr.mxu0 0.0
  %275 = vmatpush1.msra.mxu0 %v237
  %276 = vmatprep.subr.mxu0 0.0
  %277 = vmatpush1.msra.mxu0 %v238
  %278 = vmatprep.subr.mxu0 0.0
  %279 = vmatpush1.msra.mxu0 %v239
  %280 = vmatprep.subr.mxu0 0.0
  %281 = vmatpush1.msra.mxu0 %v240
  %282 = vmatprep.subr.mxu0 0.0
  %283 = vmatpush1.msra.mxu0 %v241
  %284 = vmatprep.subr.mxu0 0.0
  %285 = vmatpush1.msra.mxu0 %v242
  %286 = vmatprep.subr.mxu0 0.0
  %287 = vmatpush1.msra.mxu0 %v243
  %288 = vmatprep.subr.mxu0 0.0
  %289 = vmatpush1.msra.mxu0 %v244
  %290 = vmatprep.subr.mxu0 0.0
  %291 = vmatpush1.msra.mxu0 %v245
  %292 = vmatprep.subr.mxu0 0.0
  %293 = vmatpush1.msra.mxu0 %v246
  %294 = vmatprep.subr.mxu0 0.0
  %295 = vmatpush1.msra.mxu0 %v247
  %296 = vmatprep.subr.mxu0 0.0
  %297 = vmatpush1.msra.mxu0 %v248
  %298 = vmatprep.subr.mxu0 0.0
  %299 = vmatpush1.msra.mxu0 %v249
  %300 = vmatprep.subr.mxu0 0.0
  %301 = vmatpush1.msra.mxu0 %v250
  %302 = vmatprep.subr.mxu0 0.0
  %303 = vmatpush1.msra.mxu0 %v251
  %304 = vmatprep.subr.mxu0 0.0
  %305 = vmatpush1.msra.mxu0 %v252
  %306 = vmatprep.subr.mxu0 0.0
  %307 = vmatpush1.msra.mxu0 %v253
  %308 = vmatprep.subr.mxu0 0.0
  %309 = vmatpush1.msra.mxu0 %v254
  %310 = vmatprep.subr.mxu0 0.0
  %311 = vmatpush1.msra.mxu0 %v255
  %312 = vmatprep.subr.mxu0 0.0
  %313 = vmatpush1.msra.mxu0 %v256
  %314 = vmatprep.subr.mxu0 0.0
  %315 = vmatpush1.msra.mxu0 %v257
  %316 = vmatprep.subr.mxu0 0.0
  %317 = vmatpush1.msra.mxu0 %v258
  %318 = vmatprep.subr.mxu0 0.0
  %319 = vmatpush1.msra.mxu0 %v259
  %320 = vmatprep.subr.mxu0 0.0
  %321 = vmatpush1.msra.mxu0 %v260
  %322 = vmatprep.subr.mxu0 0.0
  %323 = vmatpush1.msra.mxu0 %v261
  %324 = vmatprep.subr.mxu0 0.0
  %325 = vmatpush1.msra.mxu0 %v262
  %326 = vmatprep.subr.mxu0 0.0
  %327 = vmatpush1.msra.mxu0 %v263
  %328 = vmatprep.mubr.f32.mxu0 %v231
  %329 = vmatmul.mubr.f32.gmra.mrb[0].mxu0 %v230
  %v330 = vpop.f32.mrb[0].mxu0
  %v331 = vadd.f32 0.0, %v330
  %v332 = vpop.f32.mrb[0].mxu0
  %333 = vdwg.mxu0
  %334 = vadd.xlane.f32.xlu0 %v331
  %v335 = vpop.xlane.xlu0 %334
  %v336 = vrcp.pop 128.0
  %v337 = vmul.f32 %v335, %v336
  %v338 = vsub.f32 %v331, %v337
  %v339 = vmul.f32 %v338, %v338
  %340 = vadd.xlane.f32.xlu0 %v339
  %v341 = vpop.xlane.xlu0 %340
  %v342 = vmul.f32 %v341, %v336
  %v343 = vadd.f32 %v342, 1e-05
  %v344 = vrsqrt.pop %v343
  %v345 = vmul.f32 %v338, %v344
  %v346 = vld [vmem:[%s5] sm:$0x1]
  %v348 = vlaneseq
  %v349 = vshrl.u32 %v348, 7
  %v350 = vsub.s32 0, %v349
  %v351 = vrot.slane %v346, %v350
  %v353 = vmul.f32 %v345, %v351
  %v354 = vld [vmem:[%s6] sm:$0x1]
  %v356 = vlaneseq
  %v357 = vshrl.u32 %v356, 7
  %v358 = vsub.s32 0, %v357
  %v359 = vrot.slane %v354, %v358
  %v361 = vadd.f32 %v353, %v359
  %vm362 = vcmp.gt.f32.partialorder %v361, 0.0
  %v363 = vmul.f32 %v361, 0.2
  %v364 = vsel %vm362, %v361, %v363
  %v365 = vld [vmem:[%s7] sm:$0xff]
  %v366 = vld [vmem:[%s7 + $0x8] sm:$0xff]
  %v367 = vld [vmem:[%s7 + $0x10] sm:$0xff]
  %v368 = vld [vmem:[%s7 + $0x18] sm:$0xff]
  %v369 = vld [vmem:[%s7 + $0x20] sm:$0xff]
  %v370 = vld [vmem:[%s7 + $0x28] sm:$0xff]
  %v371 = vld [vmem:[%s7 + $0x30] sm:$0xff]
  %v372 = vld [vmem:[%s7 + $0x38] sm:$0xff]
  %v373 = vld [vmem:[%s7 + $0x40] sm:$0xff]
  %v374 = vld [vmem:[%s7 + $0x48] sm:$0xff]
  %v375 = vld [vmem:[%s7 + $0x50] sm:$0xff]
  %v376 = vld [vmem:[%s7 + $0x58] sm:$0xff]
  %v377 = vld [vmem:[%s7 + $0x60] sm:$0xff]
  %v378 = vld [vmem:[%s7 + $0x68] sm:$0xff]
  %v379 = vld [vmem:[%s7 + $0x70] sm:$0xff]
  %v380 = vld [vmem:[%s7 + $0x78] sm:$0xff]
  %381 = vmatprep.subr.mxu0 0.0
  %382 = vmatpush1.msra.mxu0 %v365
  %383 = vmatprep.subr.mxu0 0.0
  %384 = vmatpush1.msra.mxu0 %v366
  %385 = vmatprep.subr.mxu0 0.0
  %386 = vmatpush1.msra.mxu0 %v367
  %387 = vmatprep.subr.mxu0 0.0
  %388 = vmatpush1.msra.mxu0 %v368
  %389 = vmatprep.subr.mxu0 0.0
  %390 = vmatpush1.msra.mxu0 %v369
  %391 = vmatprep.subr.mxu0 0.0
  %392 = vmatpush1.msra.mxu0 %v370
  %393 = vmatprep.subr.mxu0 0.0
  %394 = vmatpush1.msra.mxu0 %v371
  %395 = vmatprep.subr.mxu0 0.0
  %396 = vmatpush1.msra.mxu0 %v372
  %397 = vmatprep.subr.mxu0 0.0
  %398 = vmatpush1.msra.mxu0 %v373
  %399 = vmatprep.subr.mxu0 0.0
  %400 = vmatpush1.msra.mxu0 %v374
  %401 = vmatprep.subr.mxu0 0.0
  %402 = vmatpush1.msra.mxu0 %v375
  %403 = vmatprep.subr.mxu0 0.0
  %404 = vmatpush1.msra.mxu0 %v376
  %405 = vmatprep.subr.mxu0 0.0
  %406 = vmatpush1.msra.mxu0 %v377
  %407 = vmatprep.subr.mxu0 0.0
  %408 = vmatpush1.msra.mxu0 %v378
  %409 = vmatprep.subr.mxu0 0.0
  %410 = vmatpush1.msra.mxu0 %v379
  %411 = vmatprep.subr.mxu0 0.0
  %412 = vmatpush1.msra.mxu0 %v380
  %413 = vmatprep.subr.mxu0 0.0
  %414 = vmatpush1.msra.mxu0 0.0
  %415 = vmatprep.subr.mxu0 0.0
  %416 = vmatpush1.msra.mxu0 0.0
  %417 = vmatprep.subr.mxu0 0.0
  %418 = vmatpush1.msra.mxu0 0.0
  %419 = vmatprep.subr.mxu0 0.0
  %420 = vmatpush1.msra.mxu0 0.0
  %421 = vmatprep.subr.mxu0 0.0
  %422 = vmatpush1.msra.mxu0 0.0
  %423 = vmatprep.subr.mxu0 0.0
  %424 = vmatpush1.msra.mxu0 0.0
  %425 = vmatprep.subr.mxu0 0.0
  %426 = vmatpush1.msra.mxu0 0.0
  %427 = vmatprep.subr.mxu0 0.0
  %428 = vmatpush1.msra.mxu0 0.0
  %429 = vmatprep.subr.mxu0 0.0
  %430 = vmatpush1.msra.mxu0 0.0
  %431 = vmatprep.subr.mxu0 0.0
  %432 = vmatpush1.msra.mxu0 0.0
  %433 = vmatprep.subr.mxu0 0.0
  %434 = vmatpush1.msra.mxu0 0.0
  %435 = vmatprep.subr.mxu0 0.0
  %436 = vmatpush1.msra.mxu0 0.0
  %437 = vmatprep.subr.mxu0 0.0
  %438 = vmatpush1.msra.mxu0 0.0
  %439 = vmatprep.subr.mxu0 0.0
  %440 = vmatpush1.msra.mxu0 0.0
  %441 = vmatprep.subr.mxu0 0.0
  %442 = vmatpush1.msra.mxu0 0.0
  %443 = vmatprep.subr.mxu0 0.0
  %444 = vmatpush1.msra.mxu0 0.0
  %445 = vmatprep.mubr.f32.mxu0 0.0
  %446 = vmatmul.mubr.f32.gmra.mrb[0].mxu0 %v364
  %v447 = vpop.f32.mrb[0].mxu0
  %v448 = vadd.f32 0.0, %v447
  %v449 = vpop.f32.mrb[0].mxu0
  %450 = vdwg.mxu0
  %vm451 = vcmask 523264
  %v452 = vsel %vm451, %v448, 0.0
  %453 = vadd.xlane.f32.xlu0 %v452
  %v454 = vpop.xlane.xlu0 %453
  %v455 = vrcp.pop 64.0
  %v456 = vmul.f32 %v454, %v455
  %v457 = vsub.f32 %v448, %v456
  %v458 = vmul.f32 %v457, %v457
  %v459 = vsel %vm451, %v458, 0.0
  %460 = vadd.xlane.f32.xlu0 %v459
  %v461 = vpop.xlane.xlu0 %460
  %v462 = vmul.f32 %v461, %v455
  %v463 = vadd.f32 %v462, 1e-05
  %v464 = vrsqrt.pop %v463
  %v465 = vmul.f32 %v457, %v464
  %v466 = vld [vmem:[%s8] sm:$0x1]
  %v468 = vlaneseq
  %v469 = vshrl.u32 %v468, 7
  %v470 = vsub.s32 0, %v469
  %v471 = vrot.slane %v466, %v470
  %v473 = vmul.f32 %v465, %v471
  %v474 = vld [vmem:[%s9] sm:$0x1]
  %v476 = vlaneseq
  %v477 = vshrl.u32 %v476, 7
  %v478 = vsub.s32 0, %v477
  %v479 = vrot.slane %v474, %v478
  %v481 = vadd.f32 %v473, %v479
  %vm482 = vcmp.gt.f32.partialorder %v481, 0.0
  %v483 = vmul.f32 %v481, 0.2
  %v484 = vsel %vm482, %v481, %v483
  %485 = vst.msk [vmem:[%s13] sm:$0xff] %vm451, %v484
  %v486 = vld [vmem:[%s10] sm:$0x1]
  %v488 = vlaneseq
  %v489 = vshrl.u32 %v488, 7
  %v490 = vsub.s32 0, %v489
  %v491 = vrot.slane %v486, %v490
  %v493 = vmul.f32 %v484, %v491
  %v494 = vsel %vm451, %v493, 0.0
  %495 = vadd.xlane.f32.xlu0 %v494
  %v496 = vpop.xlane.xlu0 %495
  %s497 = sld [smem:[#allocation2]]
  %v498 = vstv %s497
  %v499 = vadd.f32 %v496, %v498
  %vm500 = vcmask 7168
  %501 = vst.msk [vmem:[%s12] sm:$0xff] %vm500, %v499
  // Predicated region
  $region50: #{discriminator_forward.1} parent=0 // pred_check
    _
  $region51: #{discriminator_forward.1} parent=0 // pred_check_branch
    %503 = sbr.rel (0) target = $region53
  $region52: #{discriminator_forward.1} parent=0 // pred_region
    _
  $region53: #{discriminator_forward.1} parent=0 // pred_fallthru
    _
  // Predicated region
  $region54: #{discriminator_forward.1} parent=0 // pred_check
    _
  $region55: #{discriminator_forward.1} parent=0 // pred_check_branch
    %505 = sbr.rel (0) target = $region57
  $region56: #{discriminator_forward.1} parent=0 // pred_region
    _
  $region57: #{discriminator_forward.1} parent=0 // pred_fallthru
    _
  // Predicated region
  $region58: #{discriminator_forward.1} parent=0 // pred_check
    _
  $region59: #{discriminator_forward.1} parent=0 // pred_check_branch
    %507 = sbr.rel (0) target = $region61
  $region60: #{discriminator_forward.1} parent=0 // pred_region
    _
  $region61: #{discriminator_forward.1} parent=0 // pred_fallthru
    _
  // Predicated region
  $region62: #{discriminator_forward.1} parent=0 // pred_check
    _
  $region63: #{discriminator_forward.1} parent=0 // pred_check_branch
    %509 = sbr.rel (0) target = $region65
  $region64: #{discriminator_forward.1} parent=0 // pred_region
    _
  $region65: #{discriminator_forward.1} parent=0 // pred_fallthru
    _

</llo_original>
